<compile_context>
chip_gen: v6e
topology: v6e:2x2x1
jax: 0.10.0
libtpu: 0.0.40
codegen_flags: <defaults>
</compile_context>

<pallas_src>
import functools

import jax
import jax.numpy as jnp
from jax.experimental import pallas as pl
from jax.experimental.pallas import tpu as pltpu

ALPHA = 0.5
GAMMA = 1.5  # realized in-kernel as u * sqrt(u) == u ** 1.5

NUM_CORES = 2  # leading 'parallel' grid axis (v7x has 2 TCs; no-op on v5e/v6e)


def _focal_loss_kernel(logits_ref, targets_ref, out_ref, *,
                       tile_n, tiles_per_core, n_true, inv_n):
    core = pl.program_id(0)
    i = pl.program_id(1)

    @pl.when(i == 0)
    def _init():
        out_ref[...] = jnp.zeros_like(out_ref)

    x = logits_ref[...].astype(jnp.float32)            # (tile_n, C)
    t = targets_ref[...]                               # (tile_n, 1) int32

    # log-softmax cross-entropy, per row.
    m = jnp.max(x, axis=-1, keepdims=True)
    lse = jnp.log(jnp.sum(jnp.exp(x - m), axis=-1, keepdims=True)) + m
    cls = jax.lax.broadcasted_iota(jnp.int32, x.shape, dimension=1)
    tgt_logit = jnp.sum(jnp.where(cls == t, x, 0.0), axis=-1, keepdims=True)
    ce = lse - tgt_logit                                # = -log p_t
    pt = jnp.exp(-ce)

    # focal weight: alpha * (1 - pt)**1.5 * ce, clamped, pow -> x*sqrt(x).
    u = jnp.maximum(1.0 - pt, 0.0)
    focal = ALPHA * (u * jnp.sqrt(u)) * ce              # (tile_n, 1)

    # mask out padded remainder rows (compare against true N).
    row0 = (core * tiles_per_core + i) * tile_n
    rows = row0 + jax.lax.broadcasted_iota(jnp.int32, (tile_n, 1), 0)
    masked = jnp.where(rows < n_true, focal, 0.0)

    # accumulate this tile's partial sum into the core's resident output block.
    out_ref[...] += jnp.sum(masked)

    @pl.when(i == tiles_per_core - 1)
    def _finalize():
        out_ref[...] = out_ref[...] * inv_n             # fold the mean (1/N)


def _pick_tile_n(n, num_classes, itemsize):
    # ~4 MiB per logits block => ~8 MiB double-buffered: fits scoped-VMEM defaults
    # on v5e/v6e and leaves headroom under v7x's 64 MiB physical VMEM.
    target_bytes = 4 * 1024 * 1024
    tile_n = target_bytes // max(1, num_classes * itemsize)
    tile_n = max(8, min(1024, (tile_n // 8) * 8))
    n_ceil8 = ((n + 7) // 8) * 8
    return min(tile_n, n_ceil8)


def focal_loss(logits, targets):
    """logits: [N, C] float (f32 or bf16), targets: [N] int -> scalar f32."""
    n, num_classes = logits.shape
    itemsize = jnp.dtype(logits.dtype).itemsize

    tile_n = _pick_tile_n(n, num_classes, itemsize)
    tiles_total = -(-n // tile_n)
    tiles_per_core = -(-tiles_total // NUM_CORES)
    n_pad = NUM_CORES * tiles_per_core * tile_n

    # NOTE: no dtype cast here -- the kernel casts the VMEM tile to f32.
    logits_p = jnp.pad(logits, ((0, n_pad - n), (0, 0)))
    targets_p = jnp.pad(targets.astype(jnp.int32).reshape(n, 1),
                        ((0, n_pad - n), (0, 0)))

    kernel = functools.partial(
        _focal_loss_kernel,
        tile_n=tile_n, tiles_per_core=tiles_per_core,
        n_true=n, inv_n=1.0 / n)

    # TODO(synk): for very large C (>~8-16K classes) add a trailing grid axis over C
    # with an online max/logsumexp carried in scratch instead of full-row blocks.
    out = pl.pallas_call(
        kernel,
        out_shape=jax.ShapeDtypeStruct((NUM_CORES * 8, 128), jnp.float32),
        grid=(NUM_CORES, tiles_per_core),
        in_specs=[
            pl.BlockSpec((tile_n, num_classes),
                         lambda c, i: (c * tiles_per_core + i, 0)),
            pl.BlockSpec((tile_n, 1),
                         lambda c, i: (c * tiles_per_core + i, 0)),
        ],
        out_specs=pl.BlockSpec((8, 128), lambda c, i: (c, 0)),
        compiler_params=pltpu.CompilerParams(
            dimension_semantics=("parallel", "arbitrary"),
            vmem_limit_bytes=32 * 1024 * 1024,
        ),
    )(logits_p, targets_p)

    # per-core partials live at rows 0, 8, ... column 0 (each already scaled by 1/N).
    return jnp.sum(out[::8, 0])


def _focal_loss_ref(logits, targets):
    # pure-JAX reference for sanity checking
    logp = jax.nn.log_softmax(logits.astype(jnp.float32), axis=-1)
    ce = -jnp.take_along_axis(logp, targets[:, None].astype(jnp.int32), axis=-1)[:, 0]
    pt = jnp.exp(-ce)
    return jnp.mean(ALPHA * jnp.maximum(1.0 - pt, 0.0) ** GAMMA * ce)


if __name__ == "__main__":
    key = jax.random.PRNGKey(0)
    k1, k2, k3, k4 = jax.random.split(key, 4)

    # case 1: small f32, tile-aligned (batch=8, classes=4)
    logits_a = jax.random.normal(k1, (8, 4), dtype=jnp.float32)
    targets_a = jax.random.randint(k2, (8,), 0, 4, dtype=jnp.int32)
    loss_a = focal_loss(logits_a, targets_a)
    jax.block_until_ready(loss_a)
    ref_a = _focal_loss_ref(logits_a, targets_a)
    assert jnp.allclose(loss_a, ref_a, atol=1e-5, rtol=1e-5), (loss_a, ref_a)

    # case 2: ragged N (remainder-row masking) + bf16 logits (no wrapper up-cast)
    logits_b = jax.random.normal(k3, (37, 12), dtype=jnp.float32).astype(jnp.bfloat16)
    targets_b = jax.random.randint(k4, (37,), 0, 12, dtype=jnp.int32)
    loss_b = focal_loss(logits_b, targets_b)
    jax.block_until_ready(loss_b)
    ref_b = _focal_loss_ref(logits_b, targets_b)
    assert jnp.allclose(loss_b, ref_b, atol=1e-4, rtol=1e-4), (loss_b, ref_b)

    print("KERNEL_OK")
</pallas_src>

<mosaic_0001>
module attributes {stable_mosaic.version = 11 : i64} {
  func.func @_focal_loss_kernel(%arg0: i32, %arg1: i32, %arg2: memref<8x4xf32, #tpu.memory_space<vmem>>, %arg3: memref<8x1xi32, #tpu.memory_space<vmem>>, %arg4: memref<8x128xf32, #tpu.memory_space<vmem>>) attributes {dimension_semantics = [#tpu.dimension_semantics<parallel>, #tpu.dimension_semantics<arbitrary>], iteration_bounds = array<i64: 2, 1>, scalar_prefetch = 0 : i64, scratch_operands = 0 : i64, tpu.core_type = #tpu.core_type<tc>, window_params = [{transform_indices = @transform_0, window_bounds = array<i64: 8, 4>}, {transform_indices = @transform_1, window_bounds = array<i64: 8, 1>}, {transform_indices = @transform_2, window_bounds = array<i64: 8, 128>}]} {
    %c0_i32 = arith.constant 0 : i32
    %0 = arith.cmpi eq, %arg1, %c0_i32 : i32
    %1 = arith.extui %0 : i1 to i32
    %c0_i32_0 = arith.constant 0 : i32
    %2 = arith.cmpi ne, %1, %c0_i32_0 : i32
    scf.if %2 {
      %cst_20 = arith.constant 0.000000e+00 : f32
      %55 = vector.broadcast %cst_20 : f32 to vector<8x128xf32>
      %c0_21 = arith.constant 0 : index
      %c0_22 = arith.constant 0 : index
      %56 = vector.load %arg4[%c0_21, %c0_22] : memref<8x128xf32, #tpu.memory_space<vmem>>, vector<8x128xf32>
      tpu.vector_store %arg4[%c0_21, %c0_22], %55 {strides = array<i32>} : memref<8x128xf32, #tpu.memory_space<vmem>>, vector<8x128xf32>,
    } else {
    }
    %c0 = arith.constant 0 : index
    %c0_1 = arith.constant 0 : index
    %3 = vector.load %arg2[%c0, %c0_1] : memref<8x4xf32, #tpu.memory_space<vmem>>, vector<8x4xf32>
    %c0_2 = arith.constant 0 : index
    %c0_3 = arith.constant 0 : index
    %4 = vector.load %arg3[%c0_2, %c0_3] : memref<8x1xi32, #tpu.memory_space<vmem>>, vector<8x1xi32>
    %cst = arith.constant dense<0xFF800000> : vector<8xf32>
    %5 = vector.multi_reduction <maximumf>, %3, %cst [1] : vector<8x4xf32> to vector<8xf32>
    %6 = vector.shape_cast %5 : vector<8xf32> to vector<8x1xf32>
    %7 = vector.broadcast %6 : vector<8x1xf32> to vector<8x4xf32>
    %8 = arith.subf %3, %7 : vector<8x4xf32>
    %9 = math.exp %8 : vector<8x4xf32>
    %cst_4 = arith.constant dense<0.000000e+00> : vector<8xf32>
    %10 = vector.multi_reduction <add>, %9, %cst_4 [1] : vector<8x4xf32> to vector<8xf32>
    %11 = vector.shape_cast %10 : vector<8xf32> to vector<8x1xf32>
    %12 = math.log %11 : vector<8x1xf32>
    %13 = arith.addf %12, %6 : vector<8x1xf32>
    %14 = tpu.iota {dimensions = array<i32: 1>} : vector<8x4xi32>
    %15 = vector.broadcast %4 : vector<8x1xi32> to vector<8x4xi32>
    %16 = arith.cmpi eq, %14, %15 : vector<8x4xi32>
    %cst_5 = arith.constant 0.000000e+00 : f32
    %17 = vector.broadcast %cst_5 : f32 to vector<8x4xf32>
    %18 = arith.select %16, %3, %17 : vector<8x4xi1>, vector<8x4xf32>
    %cst_6 = arith.constant dense<0.000000e+00> : vector<8xf32>
    %19 = vector.multi_reduction <add>, %18, %cst_6 [1] : vector<8x4xf32> to vector<8xf32>
    %20 = vector.shape_cast %19 : vector<8xf32> to vector<8x1xf32>
    %21 = arith.subf %13, %20 : vector<8x1xf32>
    %cst_7 = arith.constant 0.000000e+00 : f32
    %22 = vector.broadcast %cst_7 : f32 to vector<8x1xf32>
    %23 = arith.subf %22, %21 : vector<8x1xf32>
    %24 = math.exp %23 : vector<8x1xf32>
    %cst_8 = arith.constant 1.000000e+00 : f32
    %25 = vector.broadcast %cst_8 : f32 to vector<8x1xf32>
    %26 = arith.subf %25, %24 : vector<8x1xf32>
    %cst_9 = arith.constant 0.000000e+00 : f32
    %27 = vector.broadcast %cst_9 : f32 to vector<8x1xf32>
    %28 = arith.maximumf %26, %27 : vector<8x1xf32>
    %29 = math.sqrt %28 : vector<8x1xf32>
    %30 = arith.mulf %28, %29 : vector<8x1xf32>
    %cst_10 = arith.constant 5.000000e-01 : f32
    %31 = vector.broadcast %cst_10 : f32 to vector<8x1xf32>
    %32 = arith.mulf %31, %30 : vector<8x1xf32>
    %33 = arith.mulf %32, %21 : vector<8x1xf32>
    %c1_i32 = arith.constant 1 : i32
    %34 = arith.muli %arg0, %c1_i32 : i32
    %35 = arith.addi %34, %arg1 : i32
    %c8_i32 = arith.constant 8 : i32
    %36 = arith.muli %35, %c8_i32 : i32
    %37 = tpu.iota {dimensions = array<i32: 0>} : vector<8x1xi32>
    %38 = vector.broadcast %36 : i32 to vector<8x1xi32>
    %39 = arith.addi %38, %37 : vector<8x1xi32>
    %c8_i32_11 = arith.constant 8 : i32
    %40 = vector.broadcast %c8_i32_11 : i32 to vector<8x1xi32>
    %41 = arith.cmpi slt, %39, %40 : vector<8x1xi32>
    %cst_12 = arith.constant 0.000000e+00 : f32
    %42 = vector.broadcast %cst_12 : f32 to vector<8x1xf32>
    %43 = arith.select %41, %33, %42 : vector<8x1xi1>, vector<8x1xf32>
    %c0_13 = arith.constant 0 : index
    %c0_14 = arith.constant 0 : index
    %44 = vector.load %arg4[%c0_13, %c0_14] : memref<8x128xf32, #tpu.memory_space<vmem>>, vector<8x128xf32>
    %45 = vector.shape_cast %43 : vector<8x1xf32> to vector<1x8x1xf32>
    %cst_15 = arith.constant dense<0.000000e+00> : vector<1xf32>
    %46 = vector.multi_reduction <add>, %45, %cst_15 [1, 2] : vector<1x8x1xf32> to vector<1xf32>
    %47 = vector.shape_cast %46 : vector<1xf32> to vector<1x1x1xf32>
    %48 = vector.extract %47[0, 0, 0] : f32 from vector<1x1x1xf32>
    %49 = vector.broadcast %48 : f32 to vector<8x128xf32>
    %50 = arith.addf %44, %49 : vector<8x128xf32>
    %c0_16 = arith.constant 0 : index
    %c0_17 = arith.constant 0 : index
    %51 = vector.load %arg4[%c0_16, %c0_17] : memref<8x128xf32, #tpu.memory_space<vmem>>, vector<8x128xf32>
    tpu.vector_store %arg4[%c0_16, %c0_17], %50 {strides = array<i32>} : memref<8x128xf32, #tpu.memory_space<vmem>>, vector<8x128xf32>,
    %c0_i32_18 = arith.constant 0 : i32
    %52 = arith.cmpi eq, %arg1, %c0_i32_18 : i32
    %53 = arith.extui %52 : i1 to i32
    %c0_i32_19 = arith.constant 0 : i32
    %54 = arith.cmpi ne, %53, %c0_i32_19 : i32
    scf.if %54 {
      %c0_20 = arith.constant 0 : index
      %c0_21 = arith.constant 0 : index
      %55 = vector.load %arg4[%c0_20, %c0_21] : memref<8x128xf32, #tpu.memory_space<vmem>>, vector<8x128xf32>
      %cst_22 = arith.constant 1.250000e-01 : f32
      %56 = vector.broadcast %cst_22 : f32 to vector<8x128xf32>
      %57 = arith.mulf %55, %56 : vector<8x128xf32>
      %c0_23 = arith.constant 0 : index
      %c0_24 = arith.constant 0 : index
      %58 = vector.load %arg4[%c0_23, %c0_24] : memref<8x128xf32, #tpu.memory_space<vmem>>, vector<8x128xf32>
      tpu.vector_store %arg4[%c0_23, %c0_24], %57 {strides = array<i32>} : memref<8x128xf32, #tpu.memory_space<vmem>>, vector<8x128xf32>,
    } else {
    }
    return
  }
  func.func @transform_0(%arg0: i32, %arg1: i32) -> (i32, i32) {
    %c1_i32 = arith.constant 1 : i32
    %0 = arith.muli %arg0, %c1_i32 : i32
    %1 = arith.addi %0, %arg1 : i32
    %c0_i32 = arith.constant 0 : i32
    %c0_i32_0 = arith.constant 0 : i32
    return %1, %c0_i32 : i32, i32
  }
  func.func @transform_1(%arg0: i32, %arg1: i32) -> (i32, i32) {
    %c1_i32 = arith.constant 1 : i32
    %0 = arith.muli %arg0, %c1_i32 : i32
    %1 = arith.addi %0, %arg1 : i32
    %c0_i32 = arith.constant 0 : i32
    %c0_i32_0 = arith.constant 0 : i32
    return %1, %c0_i32 : i32, i32
  }
  func.func @transform_2(%arg0: i32, %arg1: i32) -> (i32, i32) {
    %c0_i32 = arith.constant 0 : i32
    %c0_i32_0 = arith.constant 0 : i32
    return %arg0, %c0_i32 : i32, i32
  }
}

</mosaic_0001>

<llo_original>
// kernel: tpu_custom_call.1
$region0: #{tpu_custom_call.1}
  #allocation0 [shape = 'u32[]', space=smem, size = 0x4, offset = 0x4, fixed_abs, tag = 'smem constant byte address 0x4 - core index']
  #allocation1 [shape = 'u32[144,128]{1,0:T(1,128)}', space=vmem, size = 0x12000, scoped, tag = 'internal scratch']
  %s0 = inlined_call_operand.vmem [shape: f32[16,4], index: 0, kind: input, shape index: {}]
  %s1 = inlined_call_operand.vmem [shape: s32[16,1], index: 1, kind: input, shape index: {}]
  %s2 = inlined_call_operand.hbm [shape: f32[16,128], index: 2, kind: output, shape index: {}]
  %s3 = sld [smem:[#allocation0]]
  $region49: #{tpu_custom_call.1} parent=0
    _
  %s5 = ssub.s32 1, %s3
  %s6 = scalar_select 0, %s5, %s3
  $region1: #{tpu_custom_call.1} parent=0
    #allocation2 [shape = 'u8[8192]{0}', space=vmem, size = 0x2000, scoped, tag = 'output window, operand 0']
    #allocation3 [shape = 's32[2]{0}', space=sflag, size = 0x8, scoped, tag = 'scoped memory for tpu_custom_call.1']
    %7 = vsyncpa [#allocation3], 0
    %s8 = scalar_lea.sflag [#allocation3], 1
    %9 = vsyncpa %s8, 0
    loop: start=0, step=1, limit=4
    $region2: #{tpu_custom_call.1} parent=1 // loop_pre_header
      _
    $region3: #{tpu_custom_call.1} parent=1 // loop_header
      %s11 = sphi 0, %s15
      %p12 = scmp.ge.s32.totalorder %s11, 4
      %s18 = sphi 0, %s30
      %s19 = sphi 0, %s26
      %s20 = sphi 0, %s18
      %s21 = sphi 0, %s19
      %s22 = sphi 0, %s20
      %s23 = sphi 0, %s21
      %s35 = sphi 0, %s37
      %s38 = sphi 0, %s35
      %s39 = sphi 0, %s38
      %s55 = sphi 0, %s39
      %s63 = sphi 0, %s65
      %s66 = sphi 0, %s63
      %s67 = sphi 0, %s66
      %s83 = sphi 0, %s67
      %s89 = sphi 0, %s91
      %s92 = sphi 0, %s89
      %s93 = sphi 0, %s92
      %s109 = sphi 0, %s93
    $region4: #{tpu_custom_call.1} parent=1 // loop_header_branch
      %14 = sbr.rel (%p12) target = $region8
    $region5: #{tpu_custom_call.1} parent=1 // loop_body
      %s16 = ssub.s32 %s11, 1
      %s17 = ssub.s32 %s11, 2
      %s24 = sadd.s32 1, %s19
      %p25 = scmp.ge.s32.totalorder %s24, 1
      %s26 = scalar_select %p25, 0, %s24
      %s27 = sadd.s32 1, %s18
      %s28 = scalar_select %p25, %s27, %s18
      %p29 = scmp.ge.s32.totalorder %s28, 2
      %s30 = scalar_select %p29, 0, %s28
      %s31 = sadd.s32 %s18, %s19
      %s32 = sadd.s32 %s30, %s26
      %s33 = ssub.s32 %s31, %s32
      %p34 = scmp.eq.s32.totalorder %s33, 0
      %s36 = sadd.s32 %s35, 1
      %s37 = scalar_select %p34, %s35, %s36
      %p40 = pneg %p34
      %p41 = scmp.eq.s32.totalorder %s11, 1
      %p42 = por %p40, %p41
      %p43 = scmp.ne.s32.totalorder %s35, %s38
      %p44 = scmp.eq.s32.totalorder %s11, 0
      %p45 = por %p43, %p44
      %p46 = scmp.ne.s32.totalorder %s35, %s38
      %p47 = scmp.eq.s32.totalorder %s16, 1
      %p48 = por %p46, %p47
      %p49 = scmp.ne.s32.totalorder %s38, %s39
      %p50 = scmp.eq.s32.totalorder %s16, 0
      %p51 = por %p49, %p50
      %p52 = scmp.ne.s32.totalorder %s38, %s39
      %p53 = scmp.eq.s32.totalorder %s17, 1
      %p54 = por %p52, %p53
      %p56 = scmp.ne.s32.totalorder %s39, %s55
      %p57 = scmp.eq.s32.totalorder %s17, 0
      %p58 = por %p56, %p57
      %s59 = sadd.s32 %s18, %s19
      %s60 = sadd.s32 %s30, %s26
      %s61 = ssub.s32 %s59, %s60
      %p62 = scmp.eq.s32.totalorder %s61, 0
      %s64 = sadd.s32 %s63, 1
      %s65 = scalar_select %p62, %s63, %s64
      %p68 = pneg %p62
      %p69 = scmp.eq.s32.totalorder %s11, 1
      %p70 = por %p68, %p69
      %p71 = scmp.ne.s32.totalorder %s63, %s66
      %p72 = scmp.eq.s32.totalorder %s11, 0
      %p73 = por %p71, %p72
      %p74 = scmp.ne.s32.totalorder %s63, %s66
      %p75 = scmp.eq.s32.totalorder %s16, 1
      %p76 = por %p74, %p75
      %p77 = scmp.ne.s32.totalorder %s66, %s67
      %p78 = scmp.eq.s32.totalorder %s16, 0
      %p79 = por %p77, %p78
      %p80 = scmp.ne.s32.totalorder %s66, %s67
      %p81 = scmp.eq.s32.totalorder %s17, 1
      %p82 = por %p80, %p81
      %p84 = scmp.ne.s32.totalorder %s67, %s83
      %p85 = scmp.eq.s32.totalorder %s17, 0
      %p86 = por %p84, %p85
      %s87 = ssub.s32 %s18, %s30
      %p88 = scmp.eq.s32.totalorder %s87, 0
      %s90 = sadd.s32 %s89, 1
      %s91 = scalar_select %p88, %s89, %s90
      %p94 = pneg %p88
      %p95 = scmp.eq.s32.totalorder %s11, 1
      %p96 = por %p94, %p95
      %p97 = scmp.ne.s32.totalorder %s89, %s92
      %p98 = scmp.eq.s32.totalorder %s11, 0
      %p99 = por %p97, %p98
      %p100 = scmp.ne.s32.totalorder %s89, %s92
      %p101 = scmp.eq.s32.totalorder %s16, 1
      %p102 = por %p100, %p101
      %p103 = scmp.ne.s32.totalorder %s92, %s93
      %p104 = scmp.eq.s32.totalorder %s16, 0
      %p105 = por %p103, %p104
      %p106 = scmp.ne.s32.totalorder %s92, %s93
      %p107 = scmp.eq.s32.totalorder %s17, 1
      %p108 = por %p106, %p107
      %p110 = scmp.ne.s32.totalorder %s93, %s109
      %p111 = scmp.eq.s32.totalorder %s17, 0
      %p112 = por %p110, %p111
      %p113 = scmp.le.s32.totalorder 1, %s11
      %p114 = scmp.lt.s32.totalorder %s11, 3
      %p115 = pnand %p113, %p114
      %p116 = pneg %p115
      // Predicated region
      $region9: #{tpu_custom_call.1} parent=5 // pred_check
        _
      $region10: #{tpu_custom_call.1} parent=5 // pred_check_branch
        %118 = sbr.rel (%p115) target = $region12
      $region11: #{tpu_custom_call.1} parent=5 // pred_region
        %s119 = ssub.s32 %s11, 1
      $region12: #{tpu_custom_call.1} parent=5 // pred_fallthru
        _
      %p120 = scmp.lt.s32.totalorder %s11, 2
      // Predicated region
      $region13: #{tpu_custom_call.1} parent=5 // pred_check
        %p121 = pneg %p120
      $region14: #{tpu_custom_call.1} parent=5 // pred_check_branch
        %123 = sbr.rel (%p121) target = $region16
      $region15: #{tpu_custom_call.1} parent=5 // pred_region
        // Predicated region
        $region17: #{tpu_custom_call.1} parent=15 // pred_check
          %p124 = pneg %p45
        $region18: #{tpu_custom_call.1} parent=15 // pred_check_branch
          %126 = sbr.rel (%p124) target = $region20
        $region19: #{tpu_custom_call.1} parent=15 // pred_region
          %s127 = sadd.s32 %s18, %s19
          %p128 = scmp.lt.s32.totalorder %s127, 1
          %s129 = scalar_select %p128, %s127, 1
          %s130 = smul.addr %s129, 8
          %s131 = scalar_lea.vmem %s0, %s130
          %s132 = sadd.s32 %s18, %s19
        $region20: #{tpu_custom_call.1} parent=15 // pred_fallthru
          _
        // Predicated region
        $region21: #{tpu_custom_call.1} parent=15 // pred_check
          %p133 = pneg %p73
        $region22: #{tpu_custom_call.1} parent=15 // pred_check_branch
          %135 = sbr.rel (%p133) target = $region24
        $region23: #{tpu_custom_call.1} parent=15 // pred_region
          %s136 = sadd.s32 %s18, %s19
          %p137 = scmp.lt.s32.totalorder %s136, 1
          %s138 = scalar_select %p137, %s136, 1
          %s139 = smul.addr %s138, 8
          %s140 = scalar_lea.vmem %s1, %s139
          %s141 = sadd.s32 %s18, %s19
        $region24: #{tpu_custom_call.1} parent=15 // pred_fallthru
          _
      $region16: #{tpu_custom_call.1} parent=5 // pred_fallthru
        _
      %p142 = scmp.le.s32.totalorder 1, %s11
      %p143 = scmp.lt.s32.totalorder %s11, 3
      %p144 = pnand %p142, %p143
      %p145 = pneg %p144
      // Predicated region
      $region25: #{tpu_custom_call.1} parent=5 // pred_check
        _
      $region26: #{tpu_custom_call.1} parent=5 // pred_check_branch
        %147 = sbr.rel (%p144) target = $region28
      $region27: #{tpu_custom_call.1} parent=5 // pred_region
        %s148 = ssub.s32 %s11, 1
        %s149 = sadd.s32 %s20, %s21
        %p150 = scmp.lt.s32.totalorder %s149, 1
        %s151 = scalar_select %p150, %s149, 1
        %s152 = smul.addr %s151, 8
        %s153 = scalar_lea.vmem %s0, %s152
        %p154 = pneg %p51
        %p155 = pneg %p48
        %s156 = sadd.s32 %s20, %s21
        %p157 = scmp.lt.s32.totalorder %s156, 1
        %s158 = scalar_select %p157, %s156, 1
        %s159 = smul.addr %s158, 8
        %s160 = scalar_lea.vmem %s1, %s159
        %p161 = pneg %p79
        %p162 = pneg %p76
        %p163 = pneg %p105
        %p164 = pneg %p102
        %s165 = sand.u32 %s92, 1
        %s166 = scalar_lea.sflag [#allocation3], %s165
        %s167 = sand.u32 %s92, 1
        %s168 = smul.addr %s167, 8
        %s169 = scalar_lea.vmem [#allocation2], %s168
        %s170 = sadd.s32 %s20, %s21
        %p171 = scmp.lt.s32.totalorder %s170, 1
        %s172 = scalar_select %p171, %s170, 1
        %s173 = smul.addr %s172, 8
        %s174 = scalar_lea.vmem %s0, %s173
        %s175 = sadd.s32 %s20, %s21
        %s176 = sadd.s32 %s20, %s21
        %p177 = scmp.lt.s32.totalorder %s176, 1
        %s178 = scalar_select %p177, %s176, 1
        %s179 = smul.addr %s178, 8
        %s180 = scalar_lea.vmem %s1, %s179
        %s181 = sadd.s32 %s20, %s21
        %p182 = scmp.eq.s32.totalorder %s21, 0
        // Predicated region
        $region29: #{tpu_custom_call.1} parent=27 // pred_check
          %p183 = pneg %p182
        $region30: #{tpu_custom_call.1} parent=27 // pred_check_branch
          %185 = sbr.rel (%p183) target = $region32
        $region31: #{tpu_custom_call.1} parent=27 // pred_region
          %186 = vst [vmem:[%s169] sm:$0xff] 0.0
        $region32: #{tpu_custom_call.1} parent=27 // pred_fallthru
          _
        %v187 = vld [vmem:[%s174] sm:$0xff]
        %v188 = vld [vmem:[%s180] sm:$0xff]
        %vm189 = vcmask 31744
        %v190 = vsel %vm189, %v187, -inf
        %191 = vmax.xlane.f32.xlu0 %v190
        %v192 = vpop.xlane.xlu0 %191
        %v193 = vsub.f32 %v187, %v192
        %v194 = vmul.f32 %v193, 1.442695
        %v195 = vpow.pop %v194
        %v196 = vsel %vm189, %v195, 0.0
        %197 = vadd.xlane.f32.xlu0 %v196
        %v198 = vpop.xlane.xlu0 %197
        %v199 = vlog2.pop %v198
        %v200 = vmul.f32 %v199, 0.6931472
        %v201 = vadd.f32 %v200, %v192
        %v202 = vlaneseq
        %v203 = vand.u32 %v202, 127
        %204 = vset.pattern.permute.xlu0 0
        %205 = vperm.xlu0 %204, %v188
        %v206 = vpop.permute.xlu0 %205
        %vm207 = vcmp.eq.s32.totalorder %v203, %v206
        %v208 = vsel %vm207, %v187, 0.0
        %v209 = vsel %vm189, %v208, 0.0
        %210 = vadd.xlane.f32.xlu0 %v209
        %v211 = vpop.xlane.xlu0 %210
        %v212 = vsub.f32 %v201, %v211
        %v213 = vsub.f32 0.0, %v212
        %v214 = vmul.f32 %v213, 1.442695
        %v215 = vpow.pop %v214
        %v216 = vsub.f32 1.0, %v215
        %v217 = vmax.f32 %v216, 0.0
        %v218 = vrsqrt.pop %v217
        %v219 = vmul.f32 %v217, %v218
        %vm220 = vcmp.eq.f32.partialorder %v217, inf
        %v221 = vsel %vm220, %v217, %v219
        %vm222 = vcmp.eq.f32.partialorder %v217, 0.0
        %v223 = vand.u32 %v217, 2147483648
        %v224 = vsel %vm222, %v223, %v221
        %v225 = vmul.f32 %v217, %v224
        %v226 = vmul.f32 %v225, 0.5
        %v227 = vmul.f32 %v226, %v212
        %s228 = sadd.s32 %s20, %s21
        %s229 = smul.u32 %s228, 8
        %v230 = vlaneseq
        %v231 = vshrl.u32 %v230, 7
        %v232 = vstv %s229
        %v233 = vadd.s32 %v232, %v231
        %vm234 = vcmp.lt.s32.totalorder %v233, 8
        %v235 = vsel %vm234, %v227, 0.0
        %v236 = vld [vmem:[%s169] sm:$0xff]
        %vm237 = vcmask 7168
        %v238 = vsel %vm237, %v235, 0.0
        %239 = vadd.xlane.f32.xlu0 %v238
        %v240 = vpop.xlane.xlu0 %239
        %v241 = vrot.slane %v240, 4
        %v242 = vadd.f32 %v240, %v241
        %v243 = vrot.slane %v242, 2
        %v244 = vadd.f32 %v242, %v243
        %v245 = vrot.slane %v244, 1
        %v246 = vadd.f32 %v244, %v245
        %s247 = vtos %v246
        %v248 = vstv %s247
        %v249 = vadd.f32 %v236, %v248
        %250 = vst [vmem:[%s169] sm:$0xff] %v249
        // Predicated region
        $region33: #{tpu_custom_call.1} parent=27 // pred_check
          %p251 = pneg %p182
        $region34: #{tpu_custom_call.1} parent=27 // pred_check_branch
          %253 = sbr.rel (%p251) target = $region36
        $region35: #{tpu_custom_call.1} parent=27 // pred_region
          %v254 = vld [vmem:[%s169] sm:$0xff]
          %v255 = vmul.f32 %v254, 0.125
          %256 = vst [vmem:[%s169] sm:$0xff] %v255
        $region36: #{tpu_custom_call.1} parent=27 // pred_fallthru
          _
        %s257 = sand.u32 %s92, 1
        %s258 = scalar_lea.sflag [#allocation3], %s257
        %s259 = sand.u32 %s92, 1
        %s260 = smul.addr %s259, 8
        %s261 = scalar_lea.vmem [#allocation2], %s260
        // Predicated region
        $region37: #{tpu_custom_call.1} parent=27 // pred_check
          %p262 = pneg %p102
        $region38: #{tpu_custom_call.1} parent=27 // pred_check_branch
          %264 = sbr.rel (%p262) target = $region40
        $region39: #{tpu_custom_call.1} parent=27 // pred_region
          %s266 = ssub.s32 128, 128
          %267 = vsyncadd %s258, %s266
          %s268 = smul.addr %s20, 128
          %s269 = scalar_lea.hbm %s2, %s268
          %s271 = sshll.u32 %s261, 4
          %s272 = int_to_ptr.vmem [resolvable:$true] %s271
          %274 = dma.vmem_to_hbm [thread:$0]  %s272, 128, %s269, %s258
        $region40: #{tpu_custom_call.1} parent=27 // pred_fallthru
          _
      $region28: #{tpu_custom_call.1} parent=5 // pred_fallthru
        _
      %p275 = scmp.le.s32.totalorder 2, %s11
      // Predicated region
      $region41: #{tpu_custom_call.1} parent=5 // pred_check
        %p276 = pneg %p275
      $region42: #{tpu_custom_call.1} parent=5 // pred_check_branch
        %278 = sbr.rel (%p276) target = $region44
      $region43: #{tpu_custom_call.1} parent=5 // pred_region
        %s279 = ssub.s32 %s11, 2
        // Predicated region
        $region45: #{tpu_custom_call.1} parent=43 // pred_check
          %p280 = pneg %p108
        $region46: #{tpu_custom_call.1} parent=43 // pred_check_branch
          %282 = sbr.rel (%p280) target = $region48
        $region47: #{tpu_custom_call.1} parent=43 // pred_region
          %s283 = sand.u32 %s93, 1
          %s284 = scalar_lea.sflag [#allocation3], %s283
          %s285 = sand.u32 %s93, 1
          %s286 = smul.addr %s285, 8
          %s287 = scalar_lea.vmem [#allocation2], %s286
          %288 = dma.done %s284, 128
        $region48: #{tpu_custom_call.1} parent=43 // pred_fallthru
          _
      $region44: #{tpu_custom_call.1} parent=5 // pred_fallthru
        _
    $region6: #{tpu_custom_call.1} parent=1 // loop_footer
      %s15 = sadd.s32 1, %s11
    $region7: #{tpu_custom_call.1} parent=1 // loop_footer_branch
      %10 = sbr.rel target = $region3
    $region8: #{tpu_custom_call.1} parent=1 // loop_exit
      _
    %289 = vsyncpa [#allocation3], 1
    %s290 = scalar_lea.sflag [#allocation3], 1
    %291 = vsyncpa %s290, 1

</llo_original>
